<compile_context>
chip_gen: v5e
topology: v5e:2x2
jax: 0.10.0
libtpu: 0.0.40
codegen_flags: <defaults>
</compile_context>

<pallas_src>
import functools

import jax
import jax.numpy as jnp
from jax.experimental import pallas as pl
from jax.experimental.pallas import tpu as pltpu


def _round_up(x, m):
    return (x + m - 1) // m * m


def _actor_kernel(x_ref, w1_ref, b1_ref, w2_ref, b2_ref, w34t_ref, b34t_ref,
                  o_ref):
    w_dtype = w1_ref.dtype                                      # f32 or bf16
    x = x_ref[...].astype(w_dtype)                              # [TB, in_dim]

    h1 = jnp.dot(x, w1_ref[...], preferred_element_type=jnp.float32)
    h1 = jnp.maximum(h1 + b1_ref[...], 0.0)                     # [TB, 128] f32

    h2 = jnp.dot(h1.astype(w_dtype), w2_ref[...],
                 preferred_element_type=jnp.float32)
    h2 = jnp.maximum(h2 + b2_ref[...], 0.0)                     # [TB, 64] f32

    # Heads computed directly in transposed (lane-dense) form:
    #   zt[d, n] = sum_k w34t[d, k] * h2[n, k]  ->  [2, TB]
    # Same contraction pattern as q @ k^T in attention; no explicit transpose.
    zt = jax.lax.dot_general(
        w34t_ref[...], h2.astype(w_dtype),
        dimension_numbers=(((1,), (1,)), ((), ())),
        preferred_element_type=jnp.float32)                     # [2, TB]
    zt = zt + b34t_ref[...]                                     # [2, 1] bias

    # Row 0 (sigmoid head) weights/bias were pre-scaled by 0.5 in init_params,
    # so a single tanh pass (EUP slot) serves both heads:
    #   sigmoid(z) = 0.5 * tanh(z / 2) + 0.5.
    t = jnp.tanh(zt)
    is_sig = jax.lax.broadcasted_iota(jnp.int32, t.shape, 0) == 0
    o_ref[...] = jnp.where(is_sig, 0.5 * t + 0.5, t).astype(o_ref.dtype)


def _vmem_limit_bytes(tb, in_dim, w_itemsize, x_itemsize):
    # Double-buffered weight/bias blocks (constant index map still allocates 2).
    wts = 2 * ((in_dim * 128 + 128 * 64 + 2 * 64) * w_itemsize
               + (128 + 64 + 2) * 4)
    # Double-buffered obs input tile and (2, tb) output tile (sublane-padded).
    io = 2 * tb * in_dim * x_itemsize + 2 * 8 * tb * 4
    # In-kernel temporaries: f32 h1/h2 + cast copies of x/h1/h2 + head vregs.
    tmp = (tb * (128 + 64) * 4
           + tb * (in_dim + 128 + 64) * w_itemsize
           + 4 * 8 * tb * 4)
    need = wts + io + tmp
    # 2x headroom, capped well below the 64 MiB physical VMEM of a v7x core.
    return int(min(48 * 1024 * 1024, max(16 * 1024 * 1024, 2 * need)))


@functools.partial(jax.jit, static_argnames=("tile_b",))
def net_actor_forward(obs, params, *, tile_b=4096):
    """obs: [B, in_dim] (f32 or bf16). params: dict from init_params. -> [B, 2] f32."""
    w1, b1 = params["w1"], params["b1"]          # [in,128], [1,128]
    w2, b2 = params["w2"], params["b2"]          # [128,64], [1,64]
    w34t, b34t = params["w34t"], params["b34t"]  # [2,64],   [2,1]

    B, in_dim = obs.shape

    # Batch tile selection:
    #  * tiny batches -> single block (grid=(1,)), no padding, no extra steps;
    #  * large batches -> big MXU/DMA-friendly tiles, multiple of 128 so the
    #    lane-dense (2, tb) output blocks are unmasked;
    #  * big single-block batches split into >=2 steps so the "parallel" batch
    #    axis can shard across TensorCores (v7x megacore); the extra grid step
    #    costs ~0.35us on 1-TC chips (v5e/v6e), which is negligible.
    if B > tile_b:
        tb = _round_up(tile_b, 128)
    elif B >= 2048:
        tb = _round_up(pl.cdiv(B, 2), 128)
    else:
        tb = _round_up(B, 8)
    n_blocks = pl.cdiv(B, tb)

    full = lambda a: pl.BlockSpec(a.shape, lambda i: (0, 0))
    # TODO(synk): weight blocks could be single-buffered (pipeline_mode=
    # pl.Buffered(1)); left at the default since they are only a few tens of KiB.

    out_t = pl.pallas_call(
        _actor_kernel,
        out_shape=jax.ShapeDtypeStruct((2, n_blocks * tb), jnp.float32),
        grid_spec=pltpu.PrefetchScalarGridSpec(
            num_scalar_prefetch=0,
            grid=(n_blocks,),
            in_specs=[
                # Ragged B handled by Pallas edge-block clamping; no wrapper
                # jnp.pad copy of obs.
                pl.BlockSpec((tb, in_dim), lambda i: (i, 0)),   # obs tile
                full(w1), full(b1),                             # VMEM-resident
                full(w2), full(b2),
                full(w34t), full(b34t),
            ],
            # Lane-dense transposed output: (2, tb) blocks -> unmasked stores.
            out_specs=pl.BlockSpec((2, tb), lambda i: (0, i)),
        ),
        compiler_params=pltpu.CompilerParams(
            dimension_semantics=("parallel",),
            vmem_limit_bytes=_vmem_limit_bytes(
                tb, in_dim,
                jnp.dtype(w1.dtype).itemsize,
                jnp.dtype(obs.dtype).itemsize)),
    )(obs, w1, b1, w2, b2, w34t, b34t)

    # [2, n_blocks*tb] -> [B, 2]; tail (clamped edge-block) lanes are discarded.
    return out_t[:, :B].T


def _xavier_uniform(key, fan_in, fan_out):
    # Matches torch.nn.init.xavier_uniform_ on a [fan_out, fan_in] weight,
    # returned here already transposed to [fan_in, fan_out].
    bound = (6.0 / (fan_in + fan_out)) ** 0.5
    return jax.random.uniform(key, (fan_in, fan_out), jnp.float32,
                              minval=-bound, maxval=bound)


def init_params(key, in_dim, dtype=jnp.float32):
    """Weights in `dtype` (bf16 recommended on v5e/v6e/v7x); biases stay f32.

    Head weights are stored transposed ([2, 64]) with the sigmoid row (row 0)
    pre-scaled by 0.5 so the kernel can use sigmoid(z) = 0.5*tanh(z/2) + 0.5
    with a single tanh pass and a lane-dense [2, B] output block.
    """
    k1, k2, k3, k4 = jax.random.split(key, 4)
    w1 = _xavier_uniform(k1, in_dim, 128).astype(dtype)
    w2 = _xavier_uniform(k2, 128, 64).astype(dtype)
    w3 = _xavier_uniform(k3, 64, 1)      # sigmoid head (linear velocity)
    w4 = _xavier_uniform(k4, 64, 1)      # tanh head (angular velocity)
    w34t = jnp.concatenate([0.5 * w3, w4], axis=1).T      # [2, 64], row 0 scaled
    return {
        "w1": w1, "b1": jnp.zeros((1, 128), jnp.float32),
        "w2": w2, "b2": jnp.zeros((1, 64), jnp.float32),
        "w34t": w34t.astype(dtype),
        "b34t": jnp.zeros((2, 1), jnp.float32),            # row 0 is 0.5*b3
    }


def net_actor_reference(obs, params):
    f32 = lambda a: a.astype(jnp.float32)
    h1 = jax.nn.relu(obs.astype(jnp.float32) @ f32(params["w1"]) + params["b1"])
    h2 = jax.nn.relu(h1 @ f32(params["w2"]) + params["b2"])
    # Undo the (exact, power-of-two) 0.5 pre-scale on the sigmoid head row.
    unscale = jnp.array([[2.0], [1.0]], jnp.float32)
    w34 = (f32(params["w34t"]) * unscale).T                # [64, 2]
    b34 = (params["b34t"] * unscale).reshape(1, 2)
    z = h2 @ w34 + b34
    return jnp.concatenate(
        [jax.nn.sigmoid(z[:, 0:1]), jnp.tanh(z[:, 1:2])], axis=-1)


if __name__ == "__main__":
    key = jax.random.PRNGKey(0)
    k_obs, k_params = jax.random.split(key)

    batch, in_dim = 8, 32
    obs = jax.random.normal(k_obs, (batch, in_dim), jnp.float32)

    # f32 path (tiny batch -> single block, grid=(1,)).
    params = init_params(k_params, in_dim)
    out = jax.block_until_ready(net_actor_forward(obs, params))
    ref = net_actor_reference(obs, params)
    assert out.shape == (batch, 2)
    assert jnp.allclose(out, ref, atol=1e-4, rtol=1e-4), "f32 mismatch vs ref"

    # bf16 MXU path; looser tolerance vs f32 reference math.
    params_bf16 = init_params(k_params, in_dim, dtype=jnp.bfloat16)
    out_bf16 = jax.block_until_ready(net_actor_forward(obs, params_bf16))
    ref_bf16 = net_actor_reference(obs, params_bf16)
    assert jnp.allclose(out_bf16, ref_bf16, atol=2e-2, rtol=2e-2), \
        "bf16 mismatch vs ref"

    # Ragged batch: multi-block grid with a clamped edge block (no obs padding).
    big_b = 1000
    obs_big = jax.random.normal(k_obs, (big_b, in_dim), jnp.float32)
    out_big = jax.block_until_ready(
        net_actor_forward(obs_big, params, tile_b=256))
    ref_big = net_actor_reference(obs_big, params)
    assert out_big.shape == (big_b, 2)
    assert jnp.allclose(out_big, ref_big, atol=1e-4, rtol=1e-4), \
        "ragged-batch mismatch vs ref"

    # Large single-tile batch exercising the >=2-step split (v7x megacore path).
    mid_b = 2500
    obs_mid = jax.random.normal(k_obs, (mid_b, in_dim), jnp.float32)
    out_mid = jax.block_until_ready(net_actor_forward(obs_mid, params))
    ref_mid = net_actor_reference(obs_mid, params)
    assert out_mid.shape == (mid_b, 2)
    assert jnp.allclose(out_mid, ref_mid, atol=1e-4, rtol=1e-4), \
        "split-batch mismatch vs ref"

    print("KERNEL_OK")
</pallas_src>

<mosaic_0001>
module attributes {stable_mosaic.version = 11 : i64} {
  func.func @_actor_kernel(%arg0: i32, %arg1: memref<8x32xf32, #tpu.memory_space<vmem>>, %arg2: memref<32x128xf32, #tpu.memory_space<vmem>>, %arg3: memref<1x128xf32, #tpu.memory_space<vmem>>, %arg4: memref<128x64xf32, #tpu.memory_space<vmem>>, %arg5: memref<1x64xf32, #tpu.memory_space<vmem>>, %arg6: memref<2x64xf32, #tpu.memory_space<vmem>>, %arg7: memref<2x1xf32, #tpu.memory_space<vmem>>, %arg8: memref<2x8xf32, #tpu.memory_space<vmem>>) attributes {dimension_semantics = [#tpu.dimension_semantics<parallel>], iteration_bounds = array<i64: 1>, scalar_prefetch = 0 : i64, scratch_operands = 0 : i64, tpu.core_type = #tpu.core_type<tc>, window_params = [{transform_indices = @transform_0, window_bounds = array<i64: 8, 32>}, {pipeline_mode = #tpu.pipeline_mode<synchronous>, transform_indices = @transform_1, window_bounds = array<i64: 32, 128>}, {pipeline_mode = #tpu.pipeline_mode<synchronous>, transform_indices = @transform_2, window_bounds = array<i64: 1, 128>}, {pipeline_mode = #tpu.pipeline_mode<synchronous>, transform_indices = @transform_3, window_bounds = array<i64: 128, 64>}, {pipeline_mode = #tpu.pipeline_mode<synchronous>, transform_indices = @transform_4, window_bounds = array<i64: 1, 64>}, {pipeline_mode = #tpu.pipeline_mode<synchronous>, transform_indices = @transform_5, window_bounds = array<i64: 2, 64>}, {pipeline_mode = #tpu.pipeline_mode<synchronous>, transform_indices = @transform_6, window_bounds = array<i64: 2, 1>}, {transform_indices = @transform_7, window_bounds = array<i64: 2, 8>}]} {
    %c0 = arith.constant 0 : index
    %c0_0 = arith.constant 0 : index
    %0 = vector.load %arg1[%c0, %c0_0] : memref<8x32xf32, #tpu.memory_space<vmem>>, vector<8x32xf32>
    %c0_1 = arith.constant 0 : index
    %c0_2 = arith.constant 0 : index
    %1 = vector.load %arg2[%c0_1, %c0_2] : memref<32x128xf32, #tpu.memory_space<vmem>>, vector<32x128xf32>
    %cst = arith.constant dense<0.000000e+00> : vector<8x128xf32>
    %2 = tpu.matmul %0, %1, %cst {dimension_numbers = #tpu.dot_dimension_numbers<[1], [0], [0], [1], [0, 0, 1, 1], [], []>} : vector<8x32xf32>, vector<32x128xf32>, vector<8x128xf32> -> vector<8x128xf32>
    %c0_3 = arith.constant 0 : index
    %c0_4 = arith.constant 0 : index
    %3 = vector.load %arg3[%c0_3, %c0_4] : memref<1x128xf32, #tpu.memory_space<vmem>>, vector<1x128xf32>
    %4 = vector.broadcast %3 : vector<1x128xf32> to vector<8x128xf32>
    %5 = arith.addf %2, %4 : vector<8x128xf32>
    %cst_5 = arith.constant 0.000000e+00 : f32
    %6 = vector.broadcast %cst_5 : f32 to vector<8x128xf32>
    %7 = arith.maximumf %5, %6 : vector<8x128xf32>
    %c0_6 = arith.constant 0 : index
    %c0_7 = arith.constant 0 : index
    %8 = vector.load %arg4[%c0_6, %c0_7] : memref<128x64xf32, #tpu.memory_space<vmem>>, vector<128x64xf32>
    %cst_8 = arith.constant dense<0.000000e+00> : vector<8x64xf32>
    %9 = tpu.matmul %7, %8, %cst_8 {dimension_numbers = #tpu.dot_dimension_numbers<[1], [0], [0], [1], [0, 0, 1, 1], [], []>} : vector<8x128xf32>, vector<128x64xf32>, vector<8x64xf32> -> vector<8x64xf32>
    %c0_9 = arith.constant 0 : index
    %c0_10 = arith.constant 0 : index
    %10 = vector.load %arg5[%c0_9, %c0_10] : memref<1x64xf32, #tpu.memory_space<vmem>>, vector<1x64xf32>
    %11 = vector.broadcast %10 : vector<1x64xf32> to vector<8x64xf32>
    %12 = arith.addf %9, %11 : vector<8x64xf32>
    %cst_11 = arith.constant 0.000000e+00 : f32
    %13 = vector.broadcast %cst_11 : f32 to vector<8x64xf32>
    %14 = arith.maximumf %12, %13 : vector<8x64xf32>
    %c0_12 = arith.constant 0 : index
    %c0_13 = arith.constant 0 : index
    %15 = vector.load %arg6[%c0_12, %c0_13] : memref<2x64xf32, #tpu.memory_space<vmem>>, vector<2x64xf32>
    %cst_14 = arith.constant dense<0.000000e+00> : vector<2x8xf32>
    %16 = tpu.matmul %15, %14, %cst_14 {dimension_numbers = #tpu.dot_dimension_numbers<[1], [1], [0], [0], [0, 0, 1, 0], [], []>} : vector<2x64xf32>, vector<8x64xf32>, vector<2x8xf32> -> vector<2x8xf32>
    %c0_15 = arith.constant 0 : index
    %c0_16 = arith.constant 0 : index
    %17 = vector.load %arg7[%c0_15, %c0_16] : memref<2x1xf32, #tpu.memory_space<vmem>>, vector<2x1xf32>
    %18 = vector.broadcast %17 : vector<2x1xf32> to vector<2x8xf32>
    %19 = arith.addf %16, %18 : vector<2x8xf32>
    %20 = math.tanh %19 : vector<2x8xf32>
    %21 = tpu.iota {dimensions = array<i32: 0>} : vector<2x8xi32>
    %c0_i32 = arith.constant 0 : i32
    %22 = vector.broadcast %c0_i32 : i32 to vector<2x8xi32>
    %23 = arith.cmpi eq, %21, %22 : vector<2x8xi32>
    %cst_17 = arith.constant 5.000000e-01 : f32
    %24 = vector.broadcast %cst_17 : f32 to vector<2x8xf32>
    %25 = arith.mulf %24, %20 : vector<2x8xf32>
    %cst_18 = arith.constant 5.000000e-01 : f32
    %26 = vector.broadcast %cst_18 : f32 to vector<2x8xf32>
    %27 = arith.addf %25, %26 : vector<2x8xf32>
    %28 = arith.select %23, %27, %20 : vector<2x8xi1>, vector<2x8xf32>
    %c0_19 = arith.constant 0 : index
    %c0_20 = arith.constant 0 : index
    %29 = vector.load %arg8[%c0_19, %c0_20] : memref<2x8xf32, #tpu.memory_space<vmem>>, vector<2x8xf32>
    tpu.vector_store %arg8[%c0_19, %c0_20], %28 {strides = array<i32>} : memref<2x8xf32, #tpu.memory_space<vmem>>, vector<2x8xf32>,
    return
  }
  func.func @transform_0(%arg0: i32) -> (i32, i32) {
    %c0_i32 = arith.constant 0 : i32
    %c0_i32_0 = arith.constant 0 : i32
    return %arg0, %c0_i32 : i32, i32
  }
  func.func @transform_1(%arg0: i32) -> (i32, i32) {
    %c0_i32 = arith.constant 0 : i32
    %c0_i32_0 = arith.constant 0 : i32
    %c0_i32_1 = arith.constant 0 : i32
    return %c0_i32, %c0_i32_0 : i32, i32
  }
  func.func @transform_2(%arg0: i32) -> (i32, i32) {
    %c0_i32 = arith.constant 0 : i32
    %c0_i32_0 = arith.constant 0 : i32
    %c0_i32_1 = arith.constant 0 : i32
    return %c0_i32, %c0_i32_0 : i32, i32
  }
  func.func @transform_3(%arg0: i32) -> (i32, i32) {
    %c0_i32 = arith.constant 0 : i32
    %c0_i32_0 = arith.constant 0 : i32
    %c0_i32_1 = arith.constant 0 : i32
    return %c0_i32, %c0_i32_0 : i32, i32
  }
  func.func @transform_4(%arg0: i32) -> (i32, i32) {
    %c0_i32 = arith.constant 0 : i32
    %c0_i32_0 = arith.constant 0 : i32
    %c0_i32_1 = arith.constant 0 : i32
    return %c0_i32, %c0_i32_0 : i32, i32
  }
  func.func @transform_5(%arg0: i32) -> (i32, i32) {
    %c0_i32 = arith.constant 0 : i32
    %c0_i32_0 = arith.constant 0 : i32
    %c0_i32_1 = arith.constant 0 : i32
    return %c0_i32, %c0_i32_0 : i32, i32
  }
  func.func @transform_6(%arg0: i32) -> (i32, i32) {
    %c0_i32 = arith.constant 0 : i32
    %c0_i32_0 = arith.constant 0 : i32
    %c0_i32_1 = arith.constant 0 : i32
    return %c0_i32, %c0_i32_0 : i32, i32
  }
  func.func @transform_7(%arg0: i32) -> (i32, i32) {
    %c0_i32 = arith.constant 0 : i32
    %c0_i32_0 = arith.constant 0 : i32
    return %c0_i32, %arg0 : i32, i32
  }
}

</mosaic_0001>

<llo_original>
// kernel: net_actor_forward.1
$region0: #{net_actor_forward.1}
  #allocation0 [shape = 'u32[]', space=smem, size = 0x4, offset = 0x4, fixed_abs, tag = 'smem constant byte address 0x4 - core index']
  #allocation1 [shape = 'u32[72,128]{1,0:T(1,128)}', space=vmem, size = 0x9000, scoped, tag = 'internal scratch']
  %s0 = inlined_call_operand.vmem [shape: f32[8,32], index: 0, kind: input, shape index: {}]
  %s1 = inlined_call_operand.vmem [shape: f32[32,128], index: 1, kind: input, shape index: {}]
  %s2 = inlined_call_operand.vmem [shape: f32[1,128], index: 2, kind: input, shape index: {}]
  %s3 = inlined_call_operand.vmem [shape: f32[128,64], index: 3, kind: input, shape index: {}]
  %s4 = inlined_call_operand.vmem [shape: f32[1,64], index: 4, kind: input, shape index: {}]
  %s5 = inlined_call_operand.vmem [shape: f32[2,64], index: 5, kind: input, shape index: {}]
  %s6 = inlined_call_operand.vmem [shape: f32[2,1], index: 6, kind: input, shape index: {}]
  %s7 = inlined_call_operand.hbm [shape: f32[2,8], index: 7, kind: output, shape index: {}]
  %s8 = sld [smem:[#allocation0]]
  $region38: #{net_actor_forward.1} parent=0
    _
  %s10 = ssub.s32 1, %s8
  %s11 = scalar_select 0, %s10, %s8
  $region1: #{net_actor_forward.1} parent=0
    #allocation2 [shape = 'u8[1024]{0}', space=vmem, size = 0x400, scoped, tag = 'output window, operand 0, single buffered']
    #allocation3 [shape = 's32[1]{0}', space=sflag, size = 0x4, scoped, tag = 'scoped memory for net_actor_forward.1']
    %12 = vsyncpa [#allocation3], 0
    // Predicated region
    $region2: #{net_actor_forward.1} parent=1 // pred_check
      _
    $region3: #{net_actor_forward.1} parent=1 // pred_check_branch
      %14 = sbr.rel (0) target = $region5
    $region4: #{net_actor_forward.1} parent=1 // pred_region
      _
    $region5: #{net_actor_forward.1} parent=1 // pred_fallthru
      _
    // Predicated region
    $region6: #{net_actor_forward.1} parent=1 // pred_check
      _
    $region7: #{net_actor_forward.1} parent=1 // pred_check_branch
      %16 = sbr.rel (0) target = $region9
    $region8: #{net_actor_forward.1} parent=1 // pred_region
      _
    $region9: #{net_actor_forward.1} parent=1 // pred_fallthru
      _
    // Predicated region
    $region10: #{net_actor_forward.1} parent=1 // pred_check
      _
    $region11: #{net_actor_forward.1} parent=1 // pred_check_branch
      %18 = sbr.rel (0) target = $region13
    $region12: #{net_actor_forward.1} parent=1 // pred_region
      _
    $region13: #{net_actor_forward.1} parent=1 // pred_fallthru
      _
    // Predicated region
    $region14: #{net_actor_forward.1} parent=1 // pred_check
      _
    $region15: #{net_actor_forward.1} parent=1 // pred_check_branch
      %20 = sbr.rel (0) target = $region17
    $region16: #{net_actor_forward.1} parent=1 // pred_region
      _
    $region17: #{net_actor_forward.1} parent=1 // pred_fallthru
      _
    // Predicated region
    $region18: #{net_actor_forward.1} parent=1 // pred_check
      _
    $region19: #{net_actor_forward.1} parent=1 // pred_check_branch
      %22 = sbr.rel (0) target = $region21
    $region20: #{net_actor_forward.1} parent=1 // pred_region
      _
    $region21: #{net_actor_forward.1} parent=1 // pred_fallthru
      _
    // Predicated region
    $region22: #{net_actor_forward.1} parent=1 // pred_check
      _
    $region23: #{net_actor_forward.1} parent=1 // pred_check_branch
      %24 = sbr.rel (0) target = $region25
    $region24: #{net_actor_forward.1} parent=1 // pred_region
      _
    $region25: #{net_actor_forward.1} parent=1 // pred_fallthru
      _
    // Predicated region
    $region26: #{net_actor_forward.1} parent=1 // pred_check
      _
    $region27: #{net_actor_forward.1} parent=1 // pred_check_branch
      %26 = sbr.rel (0) target = $region29
    $region28: #{net_actor_forward.1} parent=1 // pred_region
      _
    $region29: #{net_actor_forward.1} parent=1 // pred_fallthru
      _
    %v27 = vld [vmem:[%s0] sm:$0xff]
    %v28 = vld [vmem:[%s1] sm:$0xff]
    %v29 = vld [vmem:[%s1 + $0x8] sm:$0xff]
    %v30 = vld [vmem:[%s1 + $0x10] sm:$0xff]
    %v31 = vld [vmem:[%s1 + $0x18] sm:$0xff]
    %v32 = vld [vmem:[%s2] sm:$0x1]
    %v34 = vperm.slane %v32, 0
    %vm36 = vcmask 261120
    %v38 = vsel %vm36, %v27, 0
    %40 = vmatpush.msra.mxu0 0.0
    %41 = vmatpush.msra.mxu0 0.0
    %42 = vmatpush.msra.mxu0 0.0
    %43 = vmatpush.msra.mxu0 0.0
    %44 = vmatpush.msra.mxu0 0.0
    %45 = vmatpush.msra.mxu0 0.0
    %46 = vmatpush.msra.mxu0 0.0
    %47 = vmatpush.msra.mxu0 0.0
    %48 = vmatpush.msra.mxu0 0.0
    %49 = vmatpush.msra.mxu0 0.0
    %50 = vmatpush.msra.mxu0 0.0
    %51 = vmatpush.msra.mxu0 0.0
    %52 = vmatpush.msra.mxu0 %v31
    %53 = vmatpush.msra.mxu0 %v30
    %54 = vmatpush.msra.mxu0 %v29
    %55 = vmatpush.msra.mxu0 %v28
    %56 = vmatmul.f32.gmra.mxu0 %v38
    %v57 = vpop.f32.mrf.mxu0
    %v58 = vadd.f32 %v34, %v57
    %59 = vdwg.mxu0
    %v60 = vmax.f32 %v58, 0.0
    %v61 = vld [vmem:[%s3] sm:$0xff]
    %v62 = vld [vmem:[%s3 + $0x8] sm:$0xff]
    %v63 = vld [vmem:[%s3 + $0x10] sm:$0xff]
    %v64 = vld [vmem:[%s3 + $0x18] sm:$0xff]
    %v65 = vld [vmem:[%s3 + $0x20] sm:$0xff]
    %v66 = vld [vmem:[%s3 + $0x28] sm:$0xff]
    %v67 = vld [vmem:[%s3 + $0x30] sm:$0xff]
    %v68 = vld [vmem:[%s3 + $0x38] sm:$0xff]
    %v69 = vld [vmem:[%s3 + $0x40] sm:$0xff]
    %v70 = vld [vmem:[%s3 + $0x48] sm:$0xff]
    %v71 = vld [vmem:[%s3 + $0x50] sm:$0xff]
    %v72 = vld [vmem:[%s3 + $0x58] sm:$0xff]
    %v73 = vld [vmem:[%s3 + $0x60] sm:$0xff]
    %v74 = vld [vmem:[%s3 + $0x68] sm:$0xff]
    %v75 = vld [vmem:[%s3 + $0x70] sm:$0xff]
    %v76 = vld [vmem:[%s3 + $0x78] sm:$0xff]
    %v77 = vld [vmem:[%s4] sm:$0x1]
    %v79 = vperm.slane %v77, 0
    %81 = vmatpush.msra.mxu0 %v76
    %82 = vmatpush.msra.mxu0 %v75
    %83 = vmatpush.msra.mxu0 %v74
    %84 = vmatpush.msra.mxu0 %v73
    %85 = vmatpush.msra.mxu0 %v72
    %86 = vmatpush.msra.mxu0 %v71
    %87 = vmatpush.msra.mxu0 %v70
    %88 = vmatpush.msra.mxu0 %v69
    %89 = vmatpush.msra.mxu0 %v68
    %90 = vmatpush.msra.mxu0 %v67
    %91 = vmatpush.msra.mxu0 %v66
    %92 = vmatpush.msra.mxu0 %v65
    %93 = vmatpush.msra.mxu0 %v64
    %94 = vmatpush.msra.mxu0 %v63
    %95 = vmatpush.msra.mxu0 %v62
    %96 = vmatpush.msra.mxu0 %v61
    %97 = vmatmul.f32.gmra.mxu0 %v60
    %v98 = vpop.f32.mrf.mxu0
    %v99 = vadd.f32 %v79, %v98
    %100 = vdwg.mxu0
    %v101 = vmax.f32 %v99, 0.0
    %v102 = vld [vmem:[%s5] sm:$0x3]
    %v103 = vld [vmem:[%s6] sm:$0x3]
    %105 = vset.pattern.permute.xlu0 0
    %106 = vperm.xlu0 %105, %v103
    %v107 = vpop.permute.xlu0 %106
    %vm109 = vcmask 523264
    %v111 = vsel %vm109, %v102, 0
    %v114 = vsel %vm109, %v101, 0
    %116 = vmatpush.xpose.msra.mxu0 0.0
    %117 = vmatpush.xpose.msra.mxu0 0.0
    %118 = vmatpush.xpose.msra.mxu0 0.0
    %119 = vmatpush.xpose.msra.mxu0 0.0
    %120 = vmatpush.xpose.msra.mxu0 0.0
    %121 = vmatpush.xpose.msra.mxu0 0.0
    %122 = vmatpush.xpose.msra.mxu0 0.0
    %123 = vmatpush.xpose.msra.mxu0 0.0
    %124 = vmatpush.xpose.msra.mxu0 0.0
    %125 = vmatpush.xpose.msra.mxu0 0.0
    %126 = vmatpush.xpose.msra.mxu0 0.0
    %127 = vmatpush.xpose.msra.mxu0 0.0
    %128 = vmatpush.xpose.msra.mxu0 0.0
    %129 = vmatpush.xpose.msra.mxu0 0.0
    %130 = vmatpush.xpose.msra.mxu0 0.0
    %131 = vmatpush.xpose.msra.mxu0 %v114
    %132 = vmatmul.f32.gmra.mxu0 %v111
    %v133 = vpop.f32.mrf.mxu0
    %v134 = vadd.f32 %v107, %v133
    %135 = vdwg.mxu0
    %v136 = vtanh.pop %v134
    %v137 = vlaneseq
    %v138 = vshrl.u32 %v137, 7
    %vm139 = vcmp.eq.s32.totalorder %v138, 0
    %v140 = vmul.f32 %v136, 0.5
    %v141 = vadd.f32 %v140, 0.5
    %v142 = vsel %vm139, %v141, %v136
    %vm143 = vcmask 58368
    %144 = vst.msk [vmem:[#allocation2] sm:$0x3] %vm143, %v142
    // Predicated region
    $region30: #{net_actor_forward.1} parent=1 // pred_check
      _
    $region31: #{net_actor_forward.1} parent=1 // pred_check_branch
      %146 = sbr.rel (0) target = $region33
    $region32: #{net_actor_forward.1} parent=1 // pred_region
      %148 = vsyncadd [#allocation3], 0
      %s150 = sshll.u32 [#allocation2], 4
      %s151 = int_to_ptr.vmem [resolvable:$true] %s150
      %s152 = sshll.u32 %s7, 4
      %s153 = int_to_ptr.hbm [resolvable:$true] %s152
      %155 = dma.vmem_to_hbm [thread:$0]  %s151, 32, %s153, [#allocation3]
    $region33: #{net_actor_forward.1} parent=1 // pred_fallthru
      _
    // Predicated region
    $region34: #{net_actor_forward.1} parent=1 // pred_check
      _
    $region35: #{net_actor_forward.1} parent=1 // pred_check_branch
      %157 = sbr.rel (0) target = $region37
    $region36: #{net_actor_forward.1} parent=1 // pred_region
      %159 = dma.done [#allocation3], 32
    $region37: #{net_actor_forward.1} parent=1 // pred_fallthru
      _
    %160 = vsyncpa [#allocation3], 1

</llo_original>
